<compile_context>
chip_gen: v5e
topology: v5e:2x2
jax: 0.10.0
libtpu: 0.0.40
codegen_flags: <defaults>
</compile_context>

<pallas_src>
import functools

import numpy as np
import jax
import jax.numpy as jnp
from jax.experimental import pallas as pl
from jax.experimental.pallas import tpu as pltpu


_DEFAULT_COMPUTE_DTYPE = jnp.bfloat16


# ----------------------------------------------------------------------------
# Small planning helpers (all plain-Python, run at trace time).
# ----------------------------------------------------------------------------
def _round_up(x, m):
    return ((x + m - 1) // m) * m


def _cdiv(a, b):
    return -(-a // b)


def _balanced_tile(dim, max_tile, align):
    """(tile, n_blocks): tile is a multiple of `align`, n_blocks*tile >= dim,
    and the overshoot is < n_blocks*align (work spread evenly over blocks)."""
    dim_a = _round_up(max(int(dim), 1), align)
    max_tile = max(align, (int(max_tile) // align) * align)
    n = _cdiv(dim_a, max_tile)
    tile = _round_up(_cdiv(dim_a, n), align)
    return tile, n


@functools.lru_cache(maxsize=1)
def _vmem_budget_bytes():
    """~75% of physical VMEM: ~96 MiB on v5e/v6e (128 MiB parts), ~48 MiB on
    v7x (64 MiB).  Falls back to 48 MiB if the query is unavailable."""
    cap = 64 << 20
    try:
        info = pltpu.get_tpu_info()
        for name in ("vmem_capacity_bytes", "vmem_bytes", "vmem_size_bytes"):
            v = getattr(info, name, None)
            if v:
                cap = int(v)
                break
    except Exception:
        pass
    return (cap * 3) // 4


def _ensure_two_parallel_blocks(M, N, bm, nm, bn, nn, m_align):
    """v7x (2 TCs/chip) and megacore parts shard 'parallel' grid axes across
    cores; give the second core work when the split costs no extra padded
    MXU work."""
    if nm * nn > 1:
        return bm, nm, bn, nn
    n_a = _round_up(N, 128)
    if n_a >= 256 and n_a % 256 == 0:
        return bm, nm, n_a // 2, 2          # exact lane-aligned split
    if M >= 2 * m_align and M % (2 * m_align) == 0:
        return M // 2, 2, bn, nn            # exact row split
    return bm, nm, bn, nn


# ----------------------------------------------------------------------------
# Kernels.
# ----------------------------------------------------------------------------
def _qdense_cat_kernel(*refs, has_bias):
    """out = x @ W_cat (+ bias).  Grid (M, N, K), K innermost ("arbitrary")."""
    if has_bias:
        x_ref, w_ref, b_ref, o_ref, acc_ref = refs
    else:
        x_ref, w_ref, o_ref, acc_ref = refs
        b_ref = None
    k = pl.program_id(2)

    @pl.when(k == 0)
    def _():
        if has_bias:
            acc_ref[...] = jnp.broadcast_to(
                b_ref[...].astype(jnp.float32), acc_ref.shape)
        else:
            acc_ref[...] = jnp.zeros_like(acc_ref)

    acc_ref[...] += jnp.dot(x_ref[...], w_ref[...],
                            preferred_element_type=jnp.float32)

    @pl.when(k == pl.num_programs(2) - 1)
    def _():
        o_ref[...] = acc_ref[...].astype(o_ref.dtype)


def _qdense_quad_kernel(*refs, has_bias):
    """Small-batch path: 16 signed partial matmuls against the 4 weight
    components (4x less weight traffic than streaming W_cat)."""
    if has_bias:
        x_ref, w_ref, b_ref, o_ref, acc_ref = refs
    else:
        x_ref, w_ref, o_ref, acc_ref = refs
        b_ref = None
    k = pl.program_id(2)

    @pl.when(k == 0)
    def _():
        if has_bias:
            acc_ref[...] = jnp.broadcast_to(
                b_ref[...].astype(jnp.float32), acc_ref.shape)
        else:
            acc_ref[...] = jnp.zeros_like(acc_ref)

    xr, xi, xj, xk = x_ref[0], x_ref[1], x_ref[2], x_ref[3]
    wr, wi, wj, wk = w_ref[0], w_ref[1], w_ref[2], w_ref[3]
    dot = lambda a, b: jnp.dot(a, b, preferred_element_type=jnp.float32)

    acc_ref[0] += dot(xr, wr) - dot(xi, wi) - dot(xj, wj) - dot(xk, wk)
    acc_ref[1] += dot(xr, wi) + dot(xi, wr) + dot(xj, wk) - dot(xk, wj)
    acc_ref[2] += dot(xr, wj) - dot(xi, wk) + dot(xj, wr) + dot(xk, wi)
    acc_ref[3] += dot(xr, wk) + dot(xi, wj) - dot(xj, wi) + dot(xk, wr)

    @pl.when(k == pl.num_programs(2) - 1)
    def _():
        o_ref[...] = acc_ref[...].astype(o_ref.dtype)


# ----------------------------------------------------------------------------
# Weight assembly (hoisted to parameter-setup time by QuaternionDensePallas).
# ----------------------------------------------------------------------------
def make_quaternion_weight(w_r, w_i, w_j, w_k):
    """Hamilton block matrix W_cat of shape (4*IF, 4*OF)."""
    wrT, wiT, wjT, wkT = w_r.T, w_i.T, w_j.T, w_k.T
    return jnp.concatenate(
        [
            jnp.concatenate([wrT, wiT, wjT, wkT], axis=1),
            jnp.concatenate([-wiT, wrT, -wkT, wjT], axis=1),
            jnp.concatenate([-wjT, wkT, wrT, -wiT], axis=1),
            jnp.concatenate([-wkT, -wjT, wiT, wrT], axis=1),
        ],
        axis=0,
    )


# ----------------------------------------------------------------------------
# Forward paths (jitted; all tile planning happens at trace time).
# ----------------------------------------------------------------------------
@functools.partial(
    jax.jit,
    static_argnames=("bm_max", "bn_max", "bk", "out_dtype", "weight_buffers"))
def _cat_forward(x, w_cat, bias2, *, bm_max, bn_max, bk, out_dtype,
                 weight_buffers=2):
    """Large-batch path: out = x @ W_cat + bias.
    w_cat is already cast to the compute dtype and zero-padded along K."""
    M, K = x.shape
    k_pad, N = w_cat.shape
    compute_dtype = w_cat.dtype
    itemsize = jnp.dtype(compute_dtype).itemsize
    out_itemsize = jnp.dtype(out_dtype).itemsize

    xc = x.astype(compute_dtype)
    if k_pad != K:                       # K zero-pad only when misaligned
        xc = jnp.pad(xc, ((0, 0), (0, k_pad - K)))
    nk = k_pad // bk

    m_align = 16 if itemsize == 2 else 8   # bf16 packs 16 sublanes / vreg
    bm, nm = _balanced_tile(M, bm_max, m_align)
    if bm >= M:
        bm, nm = M, 1                     # full-dim block: no M padding ever
    bn, nn = _balanced_tile(N, bn_max, 128)
    if bn >= N:
        bn, nn = N, 1
    bm, nm, bn, nn = _ensure_two_parallel_blocks(M, N, bm, nm, bn, nn, m_align)

    has_bias = bias2 is not None

    def need(bm_, bn_):
        return (2 * (bm_ * bk + bk * bn_) * itemsize     # double-buffered in
                + 2 * bm_ * bn_ * out_itemsize           # double-buffered out
                + bm_ * bn_ * 4                          # f32 accumulator
                + (2 * bn_ * 4 if has_bias else 0))

    budget = _vmem_budget_bytes()
    while need(bm, bn) > budget and (bn > 256 or bm > 256):
        if bn >= bm and bn > 256:
            bn, nn = _balanced_tile(N, bn // 2, 128)
            if bn >= N:
                bn, nn = N, 1
        else:
            bm, nm = _balanced_tile(M, bm // 2, m_align)
            if bm >= M:
                bm, nm = M, 1
    vmem_limit = int(max(min(need(bm, bn) + (8 << 20), budget), 32 << 20))
    vmem_limit = max(vmem_limit, need(bm, bn) + (2 << 20))

    w_kwargs = {}
    if weight_buffers != 2:
        w_kwargs["pipeline_mode"] = pl.Buffered(weight_buffers)

    in_specs = [
        pl.BlockSpec((bm, bk), lambda i, j, k: (i, k)),
        pl.BlockSpec((bk, bn), lambda i, j, k: (k, j), **w_kwargs),
    ]
    inputs = [xc, w_cat]
    if has_bias:
        in_specs.append(pl.BlockSpec((1, bn), lambda i, j, k: (0, j)))
        inputs.append(bias2)

    cost = pl.CostEstimate(
        flops=2 * (nm * bm) * k_pad * (nn * bn),
        transcendentals=0,
        bytes_accessed=int(M * k_pad * itemsize * nn
                           + k_pad * N * itemsize * nm
                           + M * N * out_itemsize),
    )

    return pl.pallas_call(
        functools.partial(_qdense_cat_kernel, has_bias=has_bias),
        out_shape=jax.ShapeDtypeStruct((M, N), out_dtype),
        grid_spec=pltpu.PrefetchScalarGridSpec(
            num_scalar_prefetch=0,
            grid=(nm, nn, nk),
            in_specs=in_specs,
            out_specs=pl.BlockSpec((bm, bn), lambda i, j, k: (i, j)),
            scratch_shapes=[pltpu.VMEM((bm, bn), jnp.float32)],
        ),
        compiler_params=pltpu.CompilerParams(
            dimension_semantics=("parallel", "parallel", "arbitrary"),
            vmem_limit_bytes=vmem_limit,
        ),
        cost_estimate=cost,
    )(*inputs)


@functools.partial(
    jax.jit,
    static_argnames=("bm_max", "bn_max", "bk", "out_dtype", "weight_buffers"))
def _quad_forward(x, w_quad, bias_q, *, bm_max, bn_max, bk, out_dtype,
                  weight_buffers=2):
    """Small-batch path: weights stay as the 4 components (4, IF_pad, OF)."""
    M, K4 = x.shape
    _, kq_pad, OF = w_quad.shape
    IF = K4 // 4
    compute_dtype = w_quad.dtype
    itemsize = jnp.dtype(compute_dtype).itemsize
    out_itemsize = jnp.dtype(out_dtype).itemsize

    # (M, 4*IF) -> (4, M, IF): component-major so kernel blocks are tile-clean.
    xq = x.astype(compute_dtype).reshape(M, 4, IF).transpose(1, 0, 2)
    if kq_pad != IF:
        xq = jnp.pad(xq, ((0, 0), (0, 0), (0, kq_pad - IF)))
    nk = kq_pad // bk

    m_align = 16 if itemsize == 2 else 8
    bm, nm = _balanced_tile(M, bm_max, m_align)
    if bm >= M:
        bm, nm = M, 1
    bn, nn = _balanced_tile(OF, bn_max, 128)
    if bn >= OF:
        bn, nn = OF, 1
    bm, nm, bn, nn = _ensure_two_parallel_blocks(M, OF, bm, nm, bn, nn, m_align)

    has_bias = bias_q is not None
    need = (2 * 4 * (bm * bk + bk * bn) * itemsize
            + 2 * 4 * bm * bn * out_itemsize
            + 4 * bm * bn * 4
            + (2 * 4 * bn * 4 if has_bias else 0))
    budget = _vmem_budget_bytes()
    vmem_limit = int(max(min(need + (8 << 20), budget), 32 << 20))
    vmem_limit = max(vmem_limit, need + (2 << 20))

    w_kwargs = {}
    if weight_buffers != 2:
        w_kwargs["pipeline_mode"] = pl.Buffered(weight_buffers)

    in_specs = [
        pl.BlockSpec((4, bm, bk), lambda i, j, k: (0, i, k)),
        pl.BlockSpec((4, bk, bn), lambda i, j, k: (0, k, j), **w_kwargs),
    ]
    inputs = [xq, w_quad]
    if has_bias:
        in_specs.append(pl.BlockSpec((4, 1, bn), lambda i, j, k: (0, 0, j)))
        inputs.append(bias_q)

    cost = pl.CostEstimate(
        flops=32 * (nm * bm) * kq_pad * (nn * bn),
        transcendentals=0,
        bytes_accessed=int(4 * M * kq_pad * itemsize * nn
                           + 4 * kq_pad * OF * itemsize * nm
                           + 4 * M * OF * out_itemsize),
    )

    out = pl.pallas_call(
        functools.partial(_qdense_quad_kernel, has_bias=has_bias),
        out_shape=jax.ShapeDtypeStruct((4, M, OF), out_dtype),
        grid_spec=pltpu.PrefetchScalarGridSpec(
            num_scalar_prefetch=0,
            grid=(nm, nn, nk),
            in_specs=in_specs,
            out_specs=pl.BlockSpec((4, bm, bn), lambda i, j, k: (0, i, j)),
            scratch_shapes=[pltpu.VMEM((4, bm, bn), jnp.float32)],
        ),
        compiler_params=pltpu.CompilerParams(
            dimension_semantics=("parallel", "parallel", "arbitrary"),
            vmem_limit_bytes=vmem_limit,
        ),
        cost_estimate=cost,
    )(*inputs)
    # (4, M, OF) -> (M, 4*OF); negligible at the small batch sizes this targets.
    return out.transpose(1, 0, 2).reshape(M, 4 * OF)


# ----------------------------------------------------------------------------
# Weight-stationary layer wrapper (prep is done once and cached).
# ----------------------------------------------------------------------------
class QuaternionDensePallas:
    """Quaternion dense layer.  Weight assembly / cast / K-padding happen once
    (lazily, per kernel path) at construction time; forward calls only pad x
    along K when 4*in_features is not a multiple of 128."""

    def __init__(self, w_r, w_i, w_j, w_k, bias=None, *,
                 compute_dtype=_DEFAULT_COMPUTE_DTYPE,
                 bm=512, bn=1024, bk=2048,           # W_cat (large-batch) tiles
                 bn_small=512, bk_small=1024,        # quadrant (small-batch) tiles
                 small_batch_threshold=256,
                 weight_buffers=2):                  # set 3 for tiny-bm decode calls
        self.out_features, self.in_features = w_r.shape
        self.compute_dtype = jnp.dtype(compute_dtype)
        self.w_r, self.w_i, self.w_j, self.w_k = w_r, w_i, w_j, w_k
        self.bias = bias
        self.bm, self.bn, self.bk = bm, bn, bk
        self.bn_small, self.bk_small = bn_small, bk_small
        self.small_batch_threshold = small_batch_threshold
        self.weight_buffers = weight_buffers
        self._cat = None
        self._quad = None

    def _cat_params(self):
        if self._cat is None:
            K = 4 * self.in_features
            bk, nk = _balanced_tile(K, self.bk, 128)
            k_pad = bk * nk
            w_cat = make_quaternion_weight(
                self.w_r, self.w_i, self.w_j, self.w_k
            ).astype(self.compute_dtype)
            if k_pad != K:
                w_cat = jnp.pad(w_cat, ((0, k_pad - K), (0, 0)))
            bias2 = None if self.bias is None else (
                self.bias.astype(jnp.float32).reshape(1, -1))
            self._cat = (w_cat, bias2, bk)
        return self._cat

    def _quad_params(self):
        if self._quad is None:
            IF = self.in_features
            bk, nk = _balanced_tile(IF, self.bk_small, 128)
            kq_pad = bk * nk
            w_quad = jnp.stack(
                [self.w_r.T, self.w_i.T, self.w_j.T, self.w_k.T], axis=0
            ).astype(self.compute_dtype)
            if kq_pad != IF:
                w_quad = jnp.pad(w_quad, ((0, 0), (0, kq_pad - IF), (0, 0)))
            bias_q = None if self.bias is None else (
                self.bias.astype(jnp.float32).reshape(4, 1, self.out_features))
            self._quad = (w_quad, bias_q, bk)
        return self._quad

    def __call__(self, x, out_dtype=None):
        out_dtype = jnp.dtype(out_dtype if out_dtype is not None else x.dtype)
        assert x.shape[1] == 4 * self.in_features
        if x.shape[0] <= self.small_batch_threshold:
            w_quad, bias_q, bk = self._quad_params()
            return _quad_forward(x, w_quad, bias_q,
                                 bm_max=self.bm, bn_max=self.bn_small, bk=bk,
                                 out_dtype=out_dtype,
                                 weight_buffers=self.weight_buffers)
        w_cat, bias2, bk = self._cat_params()
        return _cat_forward(x, w_cat, bias2,
                            bm_max=self.bm, bn_max=self.bn, bk=bk,
                            out_dtype=out_dtype,
                            weight_buffers=self.weight_buffers)


def quaternion_dense_pallas(x, w_r, w_i, w_j, w_k, bias=None, **kwargs):
    """One-shot convenience wrapper.  For repeated (weight-stationary) use,
    construct QuaternionDensePallas once and reuse it so weight prep is
    hoisted out of the forward path."""
    return QuaternionDensePallas(w_r, w_i, w_j, w_k, bias, **kwargs)(x)


# ----------------------------------------------------------------------------
# Deterministic quaternion-style init (host-side numpy, like the PyTorch init)
# and a pure-JAX reference mirroring the PyTorch forward exactly.
# ----------------------------------------------------------------------------
def quaternion_init(out_features, in_features, criterion="he", seed=31337):
    shape = (out_features, in_features)
    fan_in, fan_out = in_features, out_features
    if criterion == "glorot":
        scale = 1.0 / np.sqrt(2 * (fan_in + fan_out))
    else:
        scale = 1.0 / np.sqrt(2 * fan_in)
    rng = np.random.RandomState(seed)
    modulus = rng.rayleigh(scale=scale, size=shape)
    phase = rng.uniform(low=-np.pi, high=np.pi, size=shape)
    vec = rng.normal(0.0, 1.0, size=(3,) + shape)
    vec = vec / np.sqrt(np.sum(vec ** 2, axis=0, keepdims=True))
    u_i, u_j, u_k = vec[0], vec[1], vec[2]
    w_r = modulus * np.cos(phase)
    w_i = modulus * u_i * np.sin(phase)
    w_j = modulus * u_j * np.sin(phase)
    w_k = modulus * u_k * np.sin(phase)
    return (jnp.asarray(w_r, jnp.float32), jnp.asarray(w_i, jnp.float32),
            jnp.asarray(w_j, jnp.float32), jnp.asarray(w_k, jnp.float32))


def quaternion_dense_ref(x, w_r, w_i, w_j, w_k, bias):
    IF = w_r.shape[1]
    x_r, x_i = x[:, :IF], x[:, IF:2 * IF]
    x_j, x_k = x[:, 2 * IF:3 * IF], x[:, 3 * IF:]
    lin = lambda a, w: a @ w.T
    out_r = lin(x_r, w_r) - lin(x_i, w_i) - lin(x_j, w_j) - lin(x_k, w_k)
    out_i = lin(x_r, w_i) + lin(x_i, w_r) + lin(x_j, w_k) - lin(x_k, w_j)
    out_j = lin(x_r, w_j) - lin(x_i, w_k) + lin(x_j, w_r) + lin(x_k, w_i)
    out_k = lin(x_r, w_k) + lin(x_i, w_j) - lin(x_j, w_i) + lin(x_k, w_r)
    out = jnp.concatenate([out_r, out_i, out_j, out_k], axis=1)
    if bias is not None:
        out = out + bias
    return out


if __name__ == "__main__":
    key = jax.random.PRNGKey(0)

    # --- Test 1: small aligned shapes, f32 compute, both kernel paths -------
    batch, in_features, out_features = 8, 32, 32
    k1, k2 = jax.random.split(key)
    x = jax.random.normal(k1, (batch, 4 * in_features), dtype=jnp.float32)
    w_r, w_i, w_j, w_k = quaternion_init(out_features, in_features, seed=31337)
    bias = jax.random.normal(k2, (4 * out_features,), dtype=jnp.float32) * 0.1
    ref = quaternion_dense_ref(x, w_r, w_i, w_j, w_k, bias)

    layer_f32 = QuaternionDensePallas(w_r, w_i, w_j, w_k, bias,
                                      compute_dtype=jnp.float32)
    out_small = jax.block_until_ready(layer_f32(x))          # quadrant kernel
    np.testing.assert_allclose(np.asarray(out_small), np.asarray(ref),
                               rtol=1e-5, atol=1e-5)

    layer_f32_cat = QuaternionDensePallas(w_r, w_i, w_j, w_k, bias,
                                          compute_dtype=jnp.float32,
                                          small_batch_threshold=0)
    out_cat = jax.block_until_ready(layer_f32_cat(x))        # W_cat kernel
    np.testing.assert_allclose(np.asarray(out_cat), np.asarray(ref),
                               rtol=1e-5, atol=1e-5)

    # --- Test 2: odd shapes + default bf16 compute (f32 accumulation) -------
    batch2, if2, of2 = 37, 48, 40
    k3, k4 = jax.random.split(k2)
    x2 = jax.random.normal(k3, (batch2, 4 * if2), dtype=jnp.float32)
    w_r2, w_i2, w_j2, w_k2 = quaternion_init(of2, if2, seed=123)
    bias2 = jax.random.normal(k4, (4 * of2,), dtype=jnp.float32) * 0.1
    ref2 = quaternion_dense_ref(x2, w_r2, w_i2, w_j2, w_k2, bias2)

    layer_bf16 = QuaternionDensePallas(w_r2, w_i2, w_j2, w_k2, bias2)
    out2_small = jax.block_until_ready(layer_bf16(x2))       # quadrant kernel
    np.testing.assert_allclose(np.asarray(out2_small), np.asarray(ref2),
                               rtol=2e-2, atol=2e-2)

    layer_bf16_cat = QuaternionDensePallas(w_r2, w_i2, w_j2, w_k2, bias2,
                                           small_batch_threshold=0)
    out2_cat = jax.block_until_ready(layer_bf16_cat(x2))     # W_cat kernel
    np.testing.assert_allclose(np.asarray(out2_cat), np.asarray(ref2),
                               rtol=2e-2, atol=2e-2)

    # --- Test 3: no-bias path via the convenience wrapper --------------------
    out_nb = jax.block_until_ready(
        quaternion_dense_pallas(x, w_r, w_i, w_j, w_k, None,
                                compute_dtype=jnp.float32))
    ref_nb = quaternion_dense_ref(x, w_r, w_i, w_j, w_k, None)
    np.testing.assert_allclose(np.asarray(out_nb), np.asarray(ref_nb),
                               rtol=1e-5, atol=1e-5)

    print("KERNEL_OK")
</pallas_src>

<mosaic_0001>
module attributes {stable_mosaic.version = 11 : i64} {
  func.func @_qdense_quad_kernel(%arg0: i32, %arg1: i32, %arg2: i32, %arg3: memref<4x8x128xf32, #tpu.memory_space<vmem>>, %arg4: memref<4x128x32xf32, #tpu.memory_space<vmem>>, %arg5: memref<4x1x32xf32, #tpu.memory_space<vmem>>, %arg6: memref<4x8x32xf32, #tpu.memory_space<vmem>>, %arg7: memref<4x8x32xf32, #tpu.memory_space<vmem>>) attributes {dimension_semantics = [#tpu.dimension_semantics<parallel>, #tpu.dimension_semantics<parallel>, #tpu.dimension_semantics<arbitrary>], iteration_bounds = array<i64: 1, 1, 1>, scalar_prefetch = 0 : i64, scratch_operands = 1 : i64, tpu.core_type = #tpu.core_type<tc>, window_params = [{transform_indices = @transform_0, window_bounds = array<i64: 4, 8, 128>}, {transform_indices = @transform_1, window_bounds = array<i64: 4, 128, 32>}, {transform_indices = @transform_2, window_bounds = array<i64: 4, 1, 32>}, {transform_indices = @transform_3, window_bounds = array<i64: 4, 8, 32>}]} {
    %c0_i32 = arith.constant 0 : i32
    %0 = arith.cmpi eq, %arg2, %c0_i32 : i32
    %1 = arith.extui %0 : i1 to i32
    %c0_i32_0 = arith.constant 0 : i32
    %2 = arith.cmpi ne, %1, %c0_i32_0 : i32
    scf.if %2 {
      %c0_62 = arith.constant 0 : index
      %c0_63 = arith.constant 0 : index
      %c0_64 = arith.constant 0 : index
      %74 = vector.load %arg5[%c0_62, %c0_63, %c0_64] : memref<4x1x32xf32, #tpu.memory_space<vmem>>, vector<4x1x32xf32>
      %75 = vector.shape_cast %74 : vector<4x1x32xf32> to vector<4x1x32xf32>
      %76 = vector.broadcast %75 : vector<4x1x32xf32> to vector<4x8x32xf32>
      %c0_65 = arith.constant 0 : index
      %c0_66 = arith.constant 0 : index
      %c0_67 = arith.constant 0 : index
      %77 = vector.load %arg7[%c0_65, %c0_66, %c0_67] : memref<4x8x32xf32, #tpu.memory_space<vmem>>, vector<4x8x32xf32>
      tpu.vector_store %arg7[%c0_65, %c0_66, %c0_67], %76 {strides = array<i32>} : memref<4x8x32xf32, #tpu.memory_space<vmem>>, vector<4x8x32xf32>,
    } else {
    }
    %c0 = arith.constant 0 : index
    %c0_1 = arith.constant 0 : index
    %c0_2 = arith.constant 0 : index
    %3 = vector.load %arg3[%c0, %c0_1, %c0_2] : memref<4x8x128xf32, #tpu.memory_space<vmem>>, vector<1x8x128xf32>
    %4 = vector.shape_cast %3 : vector<1x8x128xf32> to vector<8x128xf32>
    %c1 = arith.constant 1 : index
    %c0_3 = arith.constant 0 : index
    %c0_4 = arith.constant 0 : index
    %5 = vector.load %arg3[%c1, %c0_3, %c0_4] : memref<4x8x128xf32, #tpu.memory_space<vmem>>, vector<1x8x128xf32>
    %6 = vector.shape_cast %5 : vector<1x8x128xf32> to vector<8x128xf32>
    %c2 = arith.constant 2 : index
    %c0_5 = arith.constant 0 : index
    %c0_6 = arith.constant 0 : index
    %7 = vector.load %arg3[%c2, %c0_5, %c0_6] : memref<4x8x128xf32, #tpu.memory_space<vmem>>, vector<1x8x128xf32>
    %8 = vector.shape_cast %7 : vector<1x8x128xf32> to vector<8x128xf32>
    %c3 = arith.constant 3 : index
    %c0_7 = arith.constant 0 : index
    %c0_8 = arith.constant 0 : index
    %9 = vector.load %arg3[%c3, %c0_7, %c0_8] : memref<4x8x128xf32, #tpu.memory_space<vmem>>, vector<1x8x128xf32>
    %10 = vector.shape_cast %9 : vector<1x8x128xf32> to vector<8x128xf32>
    %c0_9 = arith.constant 0 : index
    %c0_10 = arith.constant 0 : index
    %c0_11 = arith.constant 0 : index
    %11 = vector.load %arg4[%c0_9, %c0_10, %c0_11] : memref<4x128x32xf32, #tpu.memory_space<vmem>>, vector<1x128x32xf32>
    %12 = vector.shape_cast %11 : vector<1x128x32xf32> to vector<128x32xf32>
    %c1_12 = arith.constant 1 : index
    %c0_13 = arith.constant 0 : index
    %c0_14 = arith.constant 0 : index
    %13 = vector.load %arg4[%c1_12, %c0_13, %c0_14] : memref<4x128x32xf32, #tpu.memory_space<vmem>>, vector<1x128x32xf32>
    %14 = vector.shape_cast %13 : vector<1x128x32xf32> to vector<128x32xf32>
    %c2_15 = arith.constant 2 : index
    %c0_16 = arith.constant 0 : index
    %c0_17 = arith.constant 0 : index
    %15 = vector.load %arg4[%c2_15, %c0_16, %c0_17] : memref<4x128x32xf32, #tpu.memory_space<vmem>>, vector<1x128x32xf32>
    %16 = vector.shape_cast %15 : vector<1x128x32xf32> to vector<128x32xf32>
    %c3_18 = arith.constant 3 : index
    %c0_19 = arith.constant 0 : index
    %c0_20 = arith.constant 0 : index
    %17 = vector.load %arg4[%c3_18, %c0_19, %c0_20] : memref<4x128x32xf32, #tpu.memory_space<vmem>>, vector<1x128x32xf32>
    %18 = vector.shape_cast %17 : vector<1x128x32xf32> to vector<128x32xf32>
    %c0_21 = arith.constant 0 : index
    %c0_22 = arith.constant 0 : index
    %c0_23 = arith.constant 0 : index
    %19 = vector.load %arg7[%c0_21, %c0_22, %c0_23] : memref<4x8x32xf32, #tpu.memory_space<vmem>>, vector<1x8x32xf32>
    %20 = vector.shape_cast %19 : vector<1x8x32xf32> to vector<8x32xf32>
    %cst = arith.constant dense<0.000000e+00> : vector<8x32xf32>
    %21 = tpu.matmul %4, %12, %cst {dimension_numbers = #tpu.dot_dimension_numbers<[1], [0], [0], [1], [0, 0, 1, 1], [], []>} : vector<8x128xf32>, vector<128x32xf32>, vector<8x32xf32> -> vector<8x32xf32>
    %cst_24 = arith.constant dense<0.000000e+00> : vector<8x32xf32>
    %22 = tpu.matmul %6, %14, %cst_24 {dimension_numbers = #tpu.dot_dimension_numbers<[1], [0], [0], [1], [0, 0, 1, 1], [], []>} : vector<8x128xf32>, vector<128x32xf32>, vector<8x32xf32> -> vector<8x32xf32>
    %23 = arith.subf %21, %22 : vector<8x32xf32>
    %cst_25 = arith.constant dense<0.000000e+00> : vector<8x32xf32>
    %24 = tpu.matmul %8, %16, %cst_25 {dimension_numbers = #tpu.dot_dimension_numbers<[1], [0], [0], [1], [0, 0, 1, 1], [], []>} : vector<8x128xf32>, vector<128x32xf32>, vector<8x32xf32> -> vector<8x32xf32>
    %25 = arith.subf %23, %24 : vector<8x32xf32>
    %cst_26 = arith.constant dense<0.000000e+00> : vector<8x32xf32>
    %26 = tpu.matmul %10, %18, %cst_26 {dimension_numbers = #tpu.dot_dimension_numbers<[1], [0], [0], [1], [0, 0, 1, 1], [], []>} : vector<8x128xf32>, vector<128x32xf32>, vector<8x32xf32> -> vector<8x32xf32>
    %27 = arith.subf %25, %26 : vector<8x32xf32>
    %28 = arith.addf %20, %27 : vector<8x32xf32>
    %c0_27 = arith.constant 0 : index
    %c0_28 = arith.constant 0 : index
    %c0_29 = arith.constant 0 : index
    %29 = vector.load %arg7[%c0_27, %c0_28, %c0_29] : memref<4x8x32xf32, #tpu.memory_space<vmem>>, vector<1x8x32xf32>
    %30 = vector.shape_cast %29 : vector<1x8x32xf32> to vector<8x32xf32>
    %31 = vector.shape_cast %28 : vector<8x32xf32> to vector<1x8x32xf32>
    tpu.vector_store %arg7[%c0_27, %c0_28, %c0_29], %31 {strides = array<i32>} : memref<4x8x32xf32, #tpu.memory_space<vmem>>, vector<1x8x32xf32>,
    %c1_30 = arith.constant 1 : index
    %c0_31 = arith.constant 0 : index
    %c0_32 = arith.constant 0 : index
    %32 = vector.load %arg7[%c1_30, %c0_31, %c0_32] : memref<4x8x32xf32, #tpu.memory_space<vmem>>, vector<1x8x32xf32>
    %33 = vector.shape_cast %32 : vector<1x8x32xf32> to vector<8x32xf32>
    %cst_33 = arith.constant dense<0.000000e+00> : vector<8x32xf32>
    %34 = tpu.matmul %4, %14, %cst_33 {dimension_numbers = #tpu.dot_dimension_numbers<[1], [0], [0], [1], [0, 0, 1, 1], [], []>} : vector<8x128xf32>, vector<128x32xf32>, vector<8x32xf32> -> vector<8x32xf32>
    %cst_34 = arith.constant dense<0.000000e+00> : vector<8x32xf32>
    %35 = tpu.matmul %6, %12, %cst_34 {dimension_numbers = #tpu.dot_dimension_numbers<[1], [0], [0], [1], [0, 0, 1, 1], [], []>} : vector<8x128xf32>, vector<128x32xf32>, vector<8x32xf32> -> vector<8x32xf32>
    %36 = arith.addf %34, %35 : vector<8x32xf32>
    %cst_35 = arith.constant dense<0.000000e+00> : vector<8x32xf32>
    %37 = tpu.matmul %8, %18, %cst_35 {dimension_numbers = #tpu.dot_dimension_numbers<[1], [0], [0], [1], [0, 0, 1, 1], [], []>} : vector<8x128xf32>, vector<128x32xf32>, vector<8x32xf32> -> vector<8x32xf32>
    %38 = arith.addf %36, %37 : vector<8x32xf32>
    %cst_36 = arith.constant dense<0.000000e+00> : vector<8x32xf32>
    %39 = tpu.matmul %10, %16, %cst_36 {dimension_numbers = #tpu.dot_dimension_numbers<[1], [0], [0], [1], [0, 0, 1, 1], [], []>} : vector<8x128xf32>, vector<128x32xf32>, vector<8x32xf32> -> vector<8x32xf32>
    %40 = arith.subf %38, %39 : vector<8x32xf32>
    %41 = arith.addf %33, %40 : vector<8x32xf32>
    %c1_37 = arith.constant 1 : index
    %c0_38 = arith.constant 0 : index
    %c0_39 = arith.constant 0 : index
    %42 = vector.load %arg7[%c1_37, %c0_38, %c0_39] : memref<4x8x32xf32, #tpu.memory_space<vmem>>, vector<1x8x32xf32>
    %43 = vector.shape_cast %42 : vector<1x8x32xf32> to vector<8x32xf32>
    %44 = vector.shape_cast %41 : vector<8x32xf32> to vector<1x8x32xf32>
    tpu.vector_store %arg7[%c1_37, %c0_38, %c0_39], %44 {strides = array<i32>} : memref<4x8x32xf32, #tpu.memory_space<vmem>>, vector<1x8x32xf32>,
    %c2_40 = arith.constant 2 : index
    %c0_41 = arith.constant 0 : index
    %c0_42 = arith.constant 0 : index
    %45 = vector.load %arg7[%c2_40, %c0_41, %c0_42] : memref<4x8x32xf32, #tpu.memory_space<vmem>>, vector<1x8x32xf32>
    %46 = vector.shape_cast %45 : vector<1x8x32xf32> to vector<8x32xf32>
    %cst_43 = arith.constant dense<0.000000e+00> : vector<8x32xf32>
    %47 = tpu.matmul %4, %16, %cst_43 {dimension_numbers = #tpu.dot_dimension_numbers<[1], [0], [0], [1], [0, 0, 1, 1], [], []>} : vector<8x128xf32>, vector<128x32xf32>, vector<8x32xf32> -> vector<8x32xf32>
    %cst_44 = arith.constant dense<0.000000e+00> : vector<8x32xf32>
    %48 = tpu.matmul %6, %18, %cst_44 {dimension_numbers = #tpu.dot_dimension_numbers<[1], [0], [0], [1], [0, 0, 1, 1], [], []>} : vector<8x128xf32>, vector<128x32xf32>, vector<8x32xf32> -> vector<8x32xf32>
    %49 = arith.subf %47, %48 : vector<8x32xf32>
    %cst_45 = arith.constant dense<0.000000e+00> : vector<8x32xf32>
    %50 = tpu.matmul %8, %12, %cst_45 {dimension_numbers = #tpu.dot_dimension_numbers<[1], [0], [0], [1], [0, 0, 1, 1], [], []>} : vector<8x128xf32>, vector<128x32xf32>, vector<8x32xf32> -> vector<8x32xf32>
    %51 = arith.addf %49, %50 : vector<8x32xf32>
    %cst_46 = arith.constant dense<0.000000e+00> : vector<8x32xf32>
    %52 = tpu.matmul %10, %14, %cst_46 {dimension_numbers = #tpu.dot_dimension_numbers<[1], [0], [0], [1], [0, 0, 1, 1], [], []>} : vector<8x128xf32>, vector<128x32xf32>, vector<8x32xf32> -> vector<8x32xf32>
    %53 = arith.addf %51, %52 : vector<8x32xf32>
    %54 = arith.addf %46, %53 : vector<8x32xf32>
    %c2_47 = arith.constant 2 : index
    %c0_48 = arith.constant 0 : index
    %c0_49 = arith.constant 0 : index
    %55 = vector.load %arg7[%c2_47, %c0_48, %c0_49] : memref<4x8x32xf32, #tpu.memory_space<vmem>>, vector<1x8x32xf32>
    %56 = vector.shape_cast %55 : vector<1x8x32xf32> to vector<8x32xf32>
    %57 = vector.shape_cast %54 : vector<8x32xf32> to vector<1x8x32xf32>
    tpu.vector_store %arg7[%c2_47, %c0_48, %c0_49], %57 {strides = array<i32>} : memref<4x8x32xf32, #tpu.memory_space<vmem>>, vector<1x8x32xf32>,
    %c3_50 = arith.constant 3 : index
    %c0_51 = arith.constant 0 : index
    %c0_52 = arith.constant 0 : index
    %58 = vector.load %arg7[%c3_50, %c0_51, %c0_52] : memref<4x8x32xf32, #tpu.memory_space<vmem>>, vector<1x8x32xf32>
    %59 = vector.shape_cast %58 : vector<1x8x32xf32> to vector<8x32xf32>
    %cst_53 = arith.constant dense<0.000000e+00> : vector<8x32xf32>
    %60 = tpu.matmul %4, %18, %cst_53 {dimension_numbers = #tpu.dot_dimension_numbers<[1], [0], [0], [1], [0, 0, 1, 1], [], []>} : vector<8x128xf32>, vector<128x32xf32>, vector<8x32xf32> -> vector<8x32xf32>
    %cst_54 = arith.constant dense<0.000000e+00> : vector<8x32xf32>
    %61 = tpu.matmul %6, %16, %cst_54 {dimension_numbers = #tpu.dot_dimension_numbers<[1], [0], [0], [1], [0, 0, 1, 1], [], []>} : vector<8x128xf32>, vector<128x32xf32>, vector<8x32xf32> -> vector<8x32xf32>
    %62 = arith.addf %60, %61 : vector<8x32xf32>
    %cst_55 = arith.constant dense<0.000000e+00> : vector<8x32xf32>
    %63 = tpu.matmul %8, %14, %cst_55 {dimension_numbers = #tpu.dot_dimension_numbers<[1], [0], [0], [1], [0, 0, 1, 1], [], []>} : vector<8x128xf32>, vector<128x32xf32>, vector<8x32xf32> -> vector<8x32xf32>
    %64 = arith.subf %62, %63 : vector<8x32xf32>
    %cst_56 = arith.constant dense<0.000000e+00> : vector<8x32xf32>
    %65 = tpu.matmul %10, %12, %cst_56 {dimension_numbers = #tpu.dot_dimension_numbers<[1], [0], [0], [1], [0, 0, 1, 1], [], []>} : vector<8x128xf32>, vector<128x32xf32>, vector<8x32xf32> -> vector<8x32xf32>
    %66 = arith.addf %64, %65 : vector<8x32xf32>
    %67 = arith.addf %59, %66 : vector<8x32xf32>
    %c3_57 = arith.constant 3 : index
    %c0_58 = arith.constant 0 : index
    %c0_59 = arith.constant 0 : index
    %68 = vector.load %arg7[%c3_57, %c0_58, %c0_59] : memref<4x8x32xf32, #tpu.memory_space<vmem>>, vector<1x8x32xf32>
    %69 = vector.shape_cast %68 : vector<1x8x32xf32> to vector<8x32xf32>
    %70 = vector.shape_cast %67 : vector<8x32xf32> to vector<1x8x32xf32>
    tpu.vector_store %arg7[%c3_57, %c0_58, %c0_59], %70 {strides = array<i32>} : memref<4x8x32xf32, #tpu.memory_space<vmem>>, vector<1x8x32xf32>,
    %c0_i32_60 = arith.constant 0 : i32
    %71 = arith.cmpi eq, %arg2, %c0_i32_60 : i32
    %72 = arith.extui %71 : i1 to i32
    %c0_i32_61 = arith.constant 0 : i32
    %73 = arith.cmpi ne, %72, %c0_i32_61 : i32
    scf.if %73 {
      %c0_62 = arith.constant 0 : index
      %c0_63 = arith.constant 0 : index
      %c0_64 = arith.constant 0 : index
      %74 = vector.load %arg7[%c0_62, %c0_63, %c0_64] : memref<4x8x32xf32, #tpu.memory_space<vmem>>, vector<4x8x32xf32>
      %c0_65 = arith.constant 0 : index
      %c0_66 = arith.constant 0 : index
      %c0_67 = arith.constant 0 : index
      %75 = vector.load %arg6[%c0_65, %c0_66, %c0_67] : memref<4x8x32xf32, #tpu.memory_space<vmem>>, vector<4x8x32xf32>
      tpu.vector_store %arg6[%c0_65, %c0_66, %c0_67], %74 {strides = array<i32>} : memref<4x8x32xf32, #tpu.memory_space<vmem>>, vector<4x8x32xf32>,
    } else {
    }
    return
  }
  func.func @transform_0(%arg0: i32, %arg1: i32, %arg2: i32) -> (i32, i32, i32) {
    %c0_i32 = arith.constant 0 : i32
    %c0_i32_0 = arith.constant 0 : i32
    return %c0_i32, %arg0, %arg2 : i32, i32, i32
  }
  func.func @transform_1(%arg0: i32, %arg1: i32, %arg2: i32) -> (i32, i32, i32) {
    %c0_i32 = arith.constant 0 : i32
    %c0_i32_0 = arith.constant 0 : i32
    return %c0_i32, %arg2, %arg1 : i32, i32, i32
  }
  func.func @transform_2(%arg0: i32, %arg1: i32, %arg2: i32) -> (i32, i32, i32) {
    %c0_i32 = arith.constant 0 : i32
    %c0_i32_0 = arith.constant 0 : i32
    %c0_i32_1 = arith.constant 0 : i32
    return %c0_i32, %c0_i32_0, %arg1 : i32, i32, i32
  }
  func.func @transform_3(%arg0: i32, %arg1: i32, %arg2: i32) -> (i32, i32, i32) {
    %c0_i32 = arith.constant 0 : i32
    %c0_i32_0 = arith.constant 0 : i32
    return %c0_i32, %arg0, %arg1 : i32, i32, i32
  }
}

</mosaic_0001>

<llo_original>
// kernel: _quad_forward.1
$region0: #{_quad_forward.1}
  #allocation0 [shape = 'u32[]', space=smem, size = 0x4, offset = 0x4, fixed_abs, tag = 'smem constant byte address 0x4 - core index']
  #allocation1 [shape = 'u32[72,128]{1,0:T(1,128)}', space=vmem, size = 0x9000, scoped, tag = 'internal scratch']
  #allocation2 [shape = 'f32[4,8,32]{2,1,0:T(8,128)}', space=vmem, size = 0x4000, scoped, tag = 'scratch operand']
  %s0 = inlined_call_operand.vmem [shape: f32[4,8,128], index: 0, kind: input, shape index: {}]
  %s1 = inlined_call_operand.vmem [shape: f32[4,128,32], index: 1, kind: input, shape index: {}]
  %s2 = inlined_call_operand.vmem [shape: f32[4,1,32], index: 2, kind: input, shape index: {}]
  %s3 = inlined_call_operand.vmem [shape: f32[4,8,32], index: 3, kind: output, shape index: {}]
  %s4 = sld [smem:[#allocation0]]
  $region30: #{_quad_forward.1} parent=0
    _
  %s6 = ssub.s32 1, %s4
  %s7 = scalar_select 0, %s6, %s4
  // Predicated region
  $region2: #{_quad_forward.1} parent=0 // pred_check
    _
  $region3: #{_quad_forward.1} parent=0 // pred_check_branch
    %9 = sbr.rel (0) target = $region5
  $region4: #{_quad_forward.1} parent=0 // pred_region
    _
  $region5: #{_quad_forward.1} parent=0 // pred_fallthru
    _
  // Predicated region
  $region6: #{_quad_forward.1} parent=0 // pred_check
    _
  $region7: #{_quad_forward.1} parent=0 // pred_check_branch
    %11 = sbr.rel (0) target = $region9
  $region8: #{_quad_forward.1} parent=0 // pred_region
    _
  $region9: #{_quad_forward.1} parent=0 // pred_fallthru
    _
  // Predicated region
  $region10: #{_quad_forward.1} parent=0 // pred_check
    _
  $region11: #{_quad_forward.1} parent=0 // pred_check_branch
    %13 = sbr.rel (0) target = $region13
  $region12: #{_quad_forward.1} parent=0 // pred_region
    _
  $region13: #{_quad_forward.1} parent=0 // pred_fallthru
    _
  %p14 = scmp.eq.s32.totalorder 0, 0
  // Predicated region
  $region14: #{_quad_forward.1} parent=0 // pred_check
    %p15 = pneg %p14
  $region15: #{_quad_forward.1} parent=0 // pred_check_branch
    %17 = sbr.rel (%p15) target = $region17
  $region16: #{_quad_forward.1} parent=0 // pred_region
    %v18 = vld [vmem:[%s2] sm:$0x1]
    %v19 = vld [vmem:[%s2 + $0x1] sm:$0x1]
    %v20 = vld [vmem:[%s2 + $0x2] sm:$0x1]
    %v21 = vld [vmem:[%s2 + $0x3] sm:$0x1]
    %v26 = vperm.slane %v18, 0
    %v27 = vperm.slane %v19, 0
    %v28 = vperm.slane %v20, 0
    %v29 = vperm.slane %v21, 0
    %vm34 = vcmask 261120
    %35 = vst.msk [vmem:[#allocation2] sm:$0xff] %vm34, %v26
    %36 = vst.msk [vmem:[#allocation2 + $0x8] sm:$0xff] %vm34, %v27
    %37 = vst.msk [vmem:[#allocation2 + $0x10] sm:$0xff] %vm34, %v28
    %38 = vst.msk [vmem:[#allocation2 + $0x18] sm:$0xff] %vm34, %v29
  $region17: #{_quad_forward.1} parent=0 // pred_fallthru
    _
  %v39 = vld [vmem:[%s0] sm:$0xff]
  %s40 = scalar_lea.vmem %s0, 8
  %v41 = vld [vmem:[%s40] sm:$0xff]
  %s42 = scalar_lea.vmem %s0, 16
  %v43 = vld [vmem:[%s42] sm:$0xff]
  %s44 = scalar_lea.vmem %s0, 24
  %v45 = vld [vmem:[%s44] sm:$0xff]
  %v46 = vld [vmem:[%s1] sm:$0xff]
  %v47 = vld [vmem:[%s1 + $0x8] sm:$0xff]
  %v48 = vld [vmem:[%s1 + $0x10] sm:$0xff]
  %v49 = vld [vmem:[%s1 + $0x18] sm:$0xff]
  %v50 = vld [vmem:[%s1 + $0x20] sm:$0xff]
  %v51 = vld [vmem:[%s1 + $0x28] sm:$0xff]
  %v52 = vld [vmem:[%s1 + $0x30] sm:$0xff]
  %v53 = vld [vmem:[%s1 + $0x38] sm:$0xff]
  %v54 = vld [vmem:[%s1 + $0x40] sm:$0xff]
  %v55 = vld [vmem:[%s1 + $0x48] sm:$0xff]
  %v56 = vld [vmem:[%s1 + $0x50] sm:$0xff]
  %v57 = vld [vmem:[%s1 + $0x58] sm:$0xff]
  %v58 = vld [vmem:[%s1 + $0x60] sm:$0xff]
  %v59 = vld [vmem:[%s1 + $0x68] sm:$0xff]
  %v60 = vld [vmem:[%s1 + $0x70] sm:$0xff]
  %v61 = vld [vmem:[%s1 + $0x78] sm:$0xff]
  %s62 = scalar_lea.vmem %s1, 128
  %v63 = vld [vmem:[%s62] sm:$0xff]
  %v64 = vld [vmem:[%s62 + $0x8] sm:$0xff]
  %v65 = vld [vmem:[%s62 + $0x10] sm:$0xff]
  %v66 = vld [vmem:[%s62 + $0x18] sm:$0xff]
  %v67 = vld [vmem:[%s62 + $0x20] sm:$0xff]
  %v68 = vld [vmem:[%s62 + $0x28] sm:$0xff]
  %v69 = vld [vmem:[%s62 + $0x30] sm:$0xff]
  %v70 = vld [vmem:[%s62 + $0x38] sm:$0xff]
  %v71 = vld [vmem:[%s62 + $0x40] sm:$0xff]
  %v72 = vld [vmem:[%s62 + $0x48] sm:$0xff]
  %v73 = vld [vmem:[%s62 + $0x50] sm:$0xff]
  %v74 = vld [vmem:[%s62 + $0x58] sm:$0xff]
  %v75 = vld [vmem:[%s62 + $0x60] sm:$0xff]
  %v76 = vld [vmem:[%s62 + $0x68] sm:$0xff]
  %v77 = vld [vmem:[%s62 + $0x70] sm:$0xff]
  %v78 = vld [vmem:[%s62 + $0x78] sm:$0xff]
  %s79 = scalar_lea.vmem %s1, 256
  %v80 = vld [vmem:[%s79] sm:$0xff]
  %v81 = vld [vmem:[%s79 + $0x8] sm:$0xff]
  %v82 = vld [vmem:[%s79 + $0x10] sm:$0xff]
  %v83 = vld [vmem:[%s79 + $0x18] sm:$0xff]
  %v84 = vld [vmem:[%s79 + $0x20] sm:$0xff]
  %v85 = vld [vmem:[%s79 + $0x28] sm:$0xff]
  %v86 = vld [vmem:[%s79 + $0x30] sm:$0xff]
  %v87 = vld [vmem:[%s79 + $0x38] sm:$0xff]
  %v88 = vld [vmem:[%s79 + $0x40] sm:$0xff]
  %v89 = vld [vmem:[%s79 + $0x48] sm:$0xff]
  %v90 = vld [vmem:[%s79 + $0x50] sm:$0xff]
  %v91 = vld [vmem:[%s79 + $0x58] sm:$0xff]
  %v92 = vld [vmem:[%s79 + $0x60] sm:$0xff]
  %v93 = vld [vmem:[%s79 + $0x68] sm:$0xff]
  %v94 = vld [vmem:[%s79 + $0x70] sm:$0xff]
  %v95 = vld [vmem:[%s79 + $0x78] sm:$0xff]
  %s96 = scalar_lea.vmem %s1, 384
  %v97 = vld [vmem:[%s96] sm:$0xff]
  %v98 = vld [vmem:[%s96 + $0x8] sm:$0xff]
  %v99 = vld [vmem:[%s96 + $0x10] sm:$0xff]
  %v100 = vld [vmem:[%s96 + $0x18] sm:$0xff]
  %v101 = vld [vmem:[%s96 + $0x20] sm:$0xff]
  %v102 = vld [vmem:[%s96 + $0x28] sm:$0xff]
  %v103 = vld [vmem:[%s96 + $0x30] sm:$0xff]
  %v104 = vld [vmem:[%s96 + $0x38] sm:$0xff]
  %v105 = vld [vmem:[%s96 + $0x40] sm:$0xff]
  %v106 = vld [vmem:[%s96 + $0x48] sm:$0xff]
  %v107 = vld [vmem:[%s96 + $0x50] sm:$0xff]
  %v108 = vld [vmem:[%s96 + $0x58] sm:$0xff]
  %v109 = vld [vmem:[%s96 + $0x60] sm:$0xff]
  %v110 = vld [vmem:[%s96 + $0x68] sm:$0xff]
  %v111 = vld [vmem:[%s96 + $0x70] sm:$0xff]
  %v112 = vld [vmem:[%s96 + $0x78] sm:$0xff]
  %v113 = vld [vmem:[#allocation2] sm:$0xff]
  %114 = vmatpush.msra.mxu0 %v61
  %115 = vmatpush.msra.mxu0 %v60
  %116 = vmatpush.msra.mxu0 %v59
  %117 = vmatpush.msra.mxu0 %v58
  %118 = vmatpush.msra.mxu0 %v57
  %119 = vmatpush.msra.mxu0 %v56
  %120 = vmatpush.msra.mxu0 %v55
  %121 = vmatpush.msra.mxu0 %v54
  %122 = vmatpush.msra.mxu0 %v53
  %123 = vmatpush.msra.mxu0 %v52
  %124 = vmatpush.msra.mxu0 %v51
  %125 = vmatpush.msra.mxu0 %v50
  %126 = vmatpush.msra.mxu0 %v49
  %127 = vmatpush.msra.mxu0 %v48
  %128 = vmatpush.msra.mxu0 %v47
  %129 = vmatpush.msra.mxu0 %v46
  %130 = vmatmul.f32.gmra.mxu0 %v39
  %v131 = vpop.f32.mrf.mxu0
  %v132 = vadd.f32 0.0, %v131
  %133 = vdwg.mxu0
  %134 = vmatpush.msra.mxu0 %v78
  %135 = vmatpush.msra.mxu0 %v77
  %136 = vmatpush.msra.mxu0 %v76
  %137 = vmatpush.msra.mxu0 %v75
  %138 = vmatpush.msra.mxu0 %v74
  %139 = vmatpush.msra.mxu0 %v73
  %140 = vmatpush.msra.mxu0 %v72
  %141 = vmatpush.msra.mxu0 %v71
  %142 = vmatpush.msra.mxu0 %v70
  %143 = vmatpush.msra.mxu0 %v69
  %144 = vmatpush.msra.mxu0 %v68
  %145 = vmatpush.msra.mxu0 %v67
  %146 = vmatpush.msra.mxu0 %v66
  %147 = vmatpush.msra.mxu0 %v65
  %148 = vmatpush.msra.mxu0 %v64
  %149 = vmatpush.msra.mxu0 %v63
  %150 = vmatmul.f32.gmra.mxu0 %v41
  %v151 = vpop.f32.mrf.mxu0
  %v152 = vadd.f32 0.0, %v151
  %153 = vdwg.mxu0
  %v154 = vsub.f32 %v132, %v152
  %155 = vmatpush.msra.mxu0 %v95
  %156 = vmatpush.msra.mxu0 %v94
  %157 = vmatpush.msra.mxu0 %v93
  %158 = vmatpush.msra.mxu0 %v92
  %159 = vmatpush.msra.mxu0 %v91
  %160 = vmatpush.msra.mxu0 %v90
  %161 = vmatpush.msra.mxu0 %v89
  %162 = vmatpush.msra.mxu0 %v88
  %163 = vmatpush.msra.mxu0 %v87
  %164 = vmatpush.msra.mxu0 %v86
  %165 = vmatpush.msra.mxu0 %v85
  %166 = vmatpush.msra.mxu0 %v84
  %167 = vmatpush.msra.mxu0 %v83
  %168 = vmatpush.msra.mxu0 %v82
  %169 = vmatpush.msra.mxu0 %v81
  %170 = vmatpush.msra.mxu0 %v80
  %171 = vmatmul.f32.gmra.mxu0 %v43
  %v172 = vpop.f32.mrf.mxu0
  %v173 = vadd.f32 0.0, %v172
  %174 = vdwg.mxu0
  %v175 = vsub.f32 %v154, %v173
  %176 = vmatpush.msra.mxu0 %v112
  %177 = vmatpush.msra.mxu0 %v111
  %178 = vmatpush.msra.mxu0 %v110
  %179 = vmatpush.msra.mxu0 %v109
  %180 = vmatpush.msra.mxu0 %v108
  %181 = vmatpush.msra.mxu0 %v107
  %182 = vmatpush.msra.mxu0 %v106
  %183 = vmatpush.msra.mxu0 %v105
  %184 = vmatpush.msra.mxu0 %v104
  %185 = vmatpush.msra.mxu0 %v103
  %186 = vmatpush.msra.mxu0 %v102
  %187 = vmatpush.msra.mxu0 %v101
  %188 = vmatpush.msra.mxu0 %v100
  %189 = vmatpush.msra.mxu0 %v99
  %190 = vmatpush.msra.mxu0 %v98
  %191 = vmatpush.msra.mxu0 %v97
  %192 = vmatmul.f32.gmra.mxu0 %v45
  %v193 = vpop.f32.mrf.mxu0
  %v194 = vadd.f32 0.0, %v193
  %195 = vdwg.mxu0
  %v196 = vsub.f32 %v175, %v194
  %v197 = vadd.f32 %v113, %v196
  %vm198 = vcmask 261120
  %199 = vst.msk [vmem:[#allocation2] sm:$0xff] %vm198, %v197
  %s200 = scalar_lea.vmem [#allocation2], 8
  %v201 = vld [vmem:[%s200] sm:$0xff]
  %202 = vmatpush.msra.mxu0 %v61
  %203 = vmatpush.msra.mxu0 %v60
  %204 = vmatpush.msra.mxu0 %v59
  %205 = vmatpush.msra.mxu0 %v58
  %206 = vmatpush.msra.mxu0 %v57
  %207 = vmatpush.msra.mxu0 %v56
  %208 = vmatpush.msra.mxu0 %v55
  %209 = vmatpush.msra.mxu0 %v54
  %210 = vmatpush.msra.mxu0 %v53
  %211 = vmatpush.msra.mxu0 %v52
  %212 = vmatpush.msra.mxu0 %v51
  %213 = vmatpush.msra.mxu0 %v50
  %214 = vmatpush.msra.mxu0 %v49
  %215 = vmatpush.msra.mxu0 %v48
  %216 = vmatpush.msra.mxu0 %v47
  %217 = vmatpush.msra.mxu0 %v46
  %218 = vmatmul.f32.gmra.mxu0 %v41
  %v219 = vpop.f32.mrf.mxu0
  %v220 = vadd.f32 0.0, %v219
  %221 = vdwg.mxu0
  %222 = vmatpush.msra.mxu0 %v78
  %223 = vmatpush.msra.mxu0 %v77
  %224 = vmatpush.msra.mxu0 %v76
  %225 = vmatpush.msra.mxu0 %v75
  %226 = vmatpush.msra.mxu0 %v74
  %227 = vmatpush.msra.mxu0 %v73
  %228 = vmatpush.msra.mxu0 %v72
  %229 = vmatpush.msra.mxu0 %v71
  %230 = vmatpush.msra.mxu0 %v70
  %231 = vmatpush.msra.mxu0 %v69
  %232 = vmatpush.msra.mxu0 %v68
  %233 = vmatpush.msra.mxu0 %v67
  %234 = vmatpush.msra.mxu0 %v66
  %235 = vmatpush.msra.mxu0 %v65
  %236 = vmatpush.msra.mxu0 %v64
  %237 = vmatpush.msra.mxu0 %v63
  %238 = vmatmul.f32.gmra.mxu0 %v39
  %v239 = vpop.f32.mrf.mxu0
  %v240 = vadd.f32 %v220, %v239
  %241 = vdwg.mxu0
  %242 = vmatpush.msra.mxu0 %v112
  %243 = vmatpush.msra.mxu0 %v111
  %244 = vmatpush.msra.mxu0 %v110
  %245 = vmatpush.msra.mxu0 %v109
  %246 = vmatpush.msra.mxu0 %v108
  %247 = vmatpush.msra.mxu0 %v107
  %248 = vmatpush.msra.mxu0 %v106
  %249 = vmatpush.msra.mxu0 %v105
  %250 = vmatpush.msra.mxu0 %v104
  %251 = vmatpush.msra.mxu0 %v103
  %252 = vmatpush.msra.mxu0 %v102
  %253 = vmatpush.msra.mxu0 %v101
  %254 = vmatpush.msra.mxu0 %v100
  %255 = vmatpush.msra.mxu0 %v99
  %256 = vmatpush.msra.mxu0 %v98
  %257 = vmatpush.msra.mxu0 %v97
  %258 = vmatmul.f32.gmra.mxu0 %v43
  %v259 = vpop.f32.mrf.mxu0
  %v260 = vadd.f32 0.0, %v259
  %261 = vdwg.mxu0
  %v262 = vadd.f32 %v240, %v260
  %263 = vmatpush.msra.mxu0 %v95
  %264 = vmatpush.msra.mxu0 %v94
  %265 = vmatpush.msra.mxu0 %v93
  %266 = vmatpush.msra.mxu0 %v92
  %267 = vmatpush.msra.mxu0 %v91
  %268 = vmatpush.msra.mxu0 %v90
  %269 = vmatpush.msra.mxu0 %v89
  %270 = vmatpush.msra.mxu0 %v88
  %271 = vmatpush.msra.mxu0 %v87
  %272 = vmatpush.msra.mxu0 %v86
  %273 = vmatpush.msra.mxu0 %v85
  %274 = vmatpush.msra.mxu0 %v84
  %275 = vmatpush.msra.mxu0 %v83
  %276 = vmatpush.msra.mxu0 %v82
  %277 = vmatpush.msra.mxu0 %v81
  %278 = vmatpush.msra.mxu0 %v80
  %279 = vmatmul.f32.gmra.mxu0 %v45
  %v280 = vpop.f32.mrf.mxu0
  %v281 = vadd.f32 0.0, %v280
  %282 = vdwg.mxu0
  %v283 = vsub.f32 %v262, %v281
  %v284 = vadd.f32 %v201, %v283
  %285 = vst.msk [vmem:[%s200] sm:$0xff] %vm198, %v284
  %s286 = scalar_lea.vmem [#allocation2], 16
  %v287 = vld [vmem:[%s286] sm:$0xff]
  %288 = vmatpush.msra.mxu0 %v95
  %289 = vmatpush.msra.mxu0 %v94
  %290 = vmatpush.msra.mxu0 %v93
  %291 = vmatpush.msra.mxu0 %v92
  %292 = vmatpush.msra.mxu0 %v91
  %293 = vmatpush.msra.mxu0 %v90
  %294 = vmatpush.msra.mxu0 %v89
  %295 = vmatpush.msra.mxu0 %v88
  %296 = vmatpush.msra.mxu0 %v87
  %297 = vmatpush.msra.mxu0 %v86
  %298 = vmatpush.msra.mxu0 %v85
  %299 = vmatpush.msra.mxu0 %v84
  %300 = vmatpush.msra.mxu0 %v83
  %301 = vmatpush.msra.mxu0 %v82
  %302 = vmatpush.msra.mxu0 %v81
  %303 = vmatpush.msra.mxu0 %v80
  %304 = vmatmul.f32.gmra.mxu0 %v39
  %v305 = vpop.f32.mrf.mxu0
  %v306 = vadd.f32 0.0, %v305
  %307 = vdwg.mxu0
  %308 = vmatpush.msra.mxu0 %v112
  %309 = vmatpush.msra.mxu0 %v111
  %310 = vmatpush.msra.mxu0 %v110
  %311 = vmatpush.msra.mxu0 %v109
  %312 = vmatpush.msra.mxu0 %v108
  %313 = vmatpush.msra.mxu0 %v107
  %314 = vmatpush.msra.mxu0 %v106
  %315 = vmatpush.msra.mxu0 %v105
  %316 = vmatpush.msra.mxu0 %v104
  %317 = vmatpush.msra.mxu0 %v103
  %318 = vmatpush.msra.mxu0 %v102
  %319 = vmatpush.msra.mxu0 %v101
  %320 = vmatpush.msra.mxu0 %v100
  %321 = vmatpush.msra.mxu0 %v99
  %322 = vmatpush.msra.mxu0 %v98
  %323 = vmatpush.msra.mxu0 %v97
  %324 = vmatmul.f32.gmra.mxu0 %v41
  %v325 = vpop.f32.mrf.mxu0
  %v326 = vadd.f32 0.0, %v325
  %327 = vdwg.mxu0
  %v328 = vsub.f32 %v306, %v326
  %329 = vmatpush.msra.mxu0 %v61
  %330 = vmatpush.msra.mxu0 %v60
  %331 = vmatpush.msra.mxu0 %v59
  %332 = vmatpush.msra.mxu0 %v58
  %333 = vmatpush.msra.mxu0 %v57
  %334 = vmatpush.msra.mxu0 %v56
  %335 = vmatpush.msra.mxu0 %v55
  %336 = vmatpush.msra.mxu0 %v54
  %337 = vmatpush.msra.mxu0 %v53
  %338 = vmatpush.msra.mxu0 %v52
  %339 = vmatpush.msra.mxu0 %v51
  %340 = vmatpush.msra.mxu0 %v50
  %341 = vmatpush.msra.mxu0 %v49
  %342 = vmatpush.msra.mxu0 %v48
  %343 = vmatpush.msra.mxu0 %v47
  %344 = vmatpush.msra.mxu0 %v46
  %345 = vmatmul.f32.gmra.mxu0 %v43
  %v346 = vpop.f32.mrf.mxu0
  %v347 = vadd.f32 0.0, %v346
  %348 = vdwg.mxu0
  %v349 = vadd.f32 %v328, %v347
  %350 = vmatpush.msra.mxu0 %v78
  %351 = vmatpush.msra.mxu0 %v77
  %352 = vmatpush.msra.mxu0 %v76
  %353 = vmatpush.msra.mxu0 %v75
  %354 = vmatpush.msra.mxu0 %v74
  %355 = vmatpush.msra.mxu0 %v73
  %356 = vmatpush.msra.mxu0 %v72
  %357 = vmatpush.msra.mxu0 %v71
  %358 = vmatpush.msra.mxu0 %v70
  %359 = vmatpush.msra.mxu0 %v69
  %360 = vmatpush.msra.mxu0 %v68
  %361 = vmatpush.msra.mxu0 %v67
  %362 = vmatpush.msra.mxu0 %v66
  %363 = vmatpush.msra.mxu0 %v65
  %364 = vmatpush.msra.mxu0 %v64
  %365 = vmatpush.msra.mxu0 %v63
  %366 = vmatmul.f32.gmra.mxu0 %v45
  %v367 = vpop.f32.mrf.mxu0
  %v368 = vadd.f32 0.0, %v367
  %369 = vdwg.mxu0
  %v370 = vadd.f32 %v349, %v368
  %v371 = vadd.f32 %v287, %v370
  %372 = vst.msk [vmem:[%s286] sm:$0xff] %vm198, %v371
  %s373 = scalar_lea.vmem [#allocation2], 24
  %v374 = vld [vmem:[%s373] sm:$0xff]
  %375 = vmatpush.msra.mxu0 %v95
  %376 = vmatpush.msra.mxu0 %v94
  %377 = vmatpush.msra.mxu0 %v93
  %378 = vmatpush.msra.mxu0 %v92
  %379 = vmatpush.msra.mxu0 %v91
  %380 = vmatpush.msra.mxu0 %v90
  %381 = vmatpush.msra.mxu0 %v89
  %382 = vmatpush.msra.mxu0 %v88
  %383 = vmatpush.msra.mxu0 %v87
  %384 = vmatpush.msra.mxu0 %v86
  %385 = vmatpush.msra.mxu0 %v85
  %386 = vmatpush.msra.mxu0 %v84
  %387 = vmatpush.msra.mxu0 %v83
  %388 = vmatpush.msra.mxu0 %v82
  %389 = vmatpush.msra.mxu0 %v81
  %390 = vmatpush.msra.mxu0 %v80
  %391 = vmatmul.f32.gmra.mxu0 %v41
  %v392 = vpop.f32.mrf.mxu0
  %v393 = vadd.f32 0.0, %v392
  %394 = vdwg.mxu0
  %395 = vmatpush.msra.mxu0 %v112
  %396 = vmatpush.msra.mxu0 %v111
  %397 = vmatpush.msra.mxu0 %v110
  %398 = vmatpush.msra.mxu0 %v109
  %399 = vmatpush.msra.mxu0 %v108
  %400 = vmatpush.msra.mxu0 %v107
  %401 = vmatpush.msra.mxu0 %v106
  %402 = vmatpush.msra.mxu0 %v105
  %403 = vmatpush.msra.mxu0 %v104
  %404 = vmatpush.msra.mxu0 %v103
  %405 = vmatpush.msra.mxu0 %v102
  %406 = vmatpush.msra.mxu0 %v101
  %407 = vmatpush.msra.mxu0 %v100
  %408 = vmatpush.msra.mxu0 %v99
  %409 = vmatpush.msra.mxu0 %v98
  %410 = vmatpush.msra.mxu0 %v97
  %411 = vmatmul.f32.gmra.mxu0 %v39
  %v412 = vpop.f32.mrf.mxu0
  %v413 = vadd.f32 %v393, %v412
  %414 = vdwg.mxu0
  %415 = vmatpush.msra.mxu0 %v78
  %416 = vmatpush.msra.mxu0 %v77
  %417 = vmatpush.msra.mxu0 %v76
  %418 = vmatpush.msra.mxu0 %v75
  %419 = vmatpush.msra.mxu0 %v74
  %420 = vmatpush.msra.mxu0 %v73
  %421 = vmatpush.msra.mxu0 %v72
  %422 = vmatpush.msra.mxu0 %v71
  %423 = vmatpush.msra.mxu0 %v70
  %424 = vmatpush.msra.mxu0 %v69
  %425 = vmatpush.msra.mxu0 %v68
  %426 = vmatpush.msra.mxu0 %v67
  %427 = vmatpush.msra.mxu0 %v66
  %428 = vmatpush.msra.mxu0 %v65
  %429 = vmatpush.msra.mxu0 %v64
  %430 = vmatpush.msra.mxu0 %v63
  %431 = vmatmul.f32.gmra.mxu0 %v43
  %v432 = vpop.f32.mrf.mxu0
  %v433 = vadd.f32 0.0, %v432
  %434 = vdwg.mxu0
  %v435 = vsub.f32 %v413, %v433
  %436 = vmatpush.msra.mxu0 %v61
  %437 = vmatpush.msra.mxu0 %v60
  %438 = vmatpush.msra.mxu0 %v59
  %439 = vmatpush.msra.mxu0 %v58
  %440 = vmatpush.msra.mxu0 %v57
  %441 = vmatpush.msra.mxu0 %v56
  %442 = vmatpush.msra.mxu0 %v55
  %443 = vmatpush.msra.mxu0 %v54
  %444 = vmatpush.msra.mxu0 %v53
  %445 = vmatpush.msra.mxu0 %v52
  %446 = vmatpush.msra.mxu0 %v51
  %447 = vmatpush.msra.mxu0 %v50
  %448 = vmatpush.msra.mxu0 %v49
  %449 = vmatpush.msra.mxu0 %v48
  %450 = vmatpush.msra.mxu0 %v47
  %451 = vmatpush.msra.mxu0 %v46
  %452 = vmatmul.f32.gmra.mxu0 %v45
  %v453 = vpop.f32.mrf.mxu0
  %v454 = vadd.f32 0.0, %v453
  %455 = vdwg.mxu0
  %v456 = vadd.f32 %v435, %v454
  %v457 = vadd.f32 %v374, %v456
  %458 = vst.msk [vmem:[%s373] sm:$0xff] %vm198, %v457
  // Predicated region
  $region18: #{_quad_forward.1} parent=0 // pred_check
    %p459 = pneg %p14
  $region19: #{_quad_forward.1} parent=0 // pred_check_branch
    %461 = sbr.rel (%p459) target = $region21
  $region20: #{_quad_forward.1} parent=0 // pred_region
    %v462 = vld [vmem:[#allocation2] sm:$0xff]
    %v463 = vld [vmem:[#allocation2 + $0x8] sm:$0xff]
    %v464 = vld [vmem:[#allocation2 + $0x10] sm:$0xff]
    %v465 = vld [vmem:[#allocation2 + $0x18] sm:$0xff]
    %466 = vst.msk [vmem:[%s3] sm:$0xff] %vm198, %v462
    %467 = vst.msk [vmem:[%s3 + $0x8] sm:$0xff] %vm198, %v463
    %468 = vst.msk [vmem:[%s3 + $0x10] sm:$0xff] %vm198, %v464
    %469 = vst.msk [vmem:[%s3 + $0x18] sm:$0xff] %vm198, %v465
  $region21: #{_quad_forward.1} parent=0 // pred_fallthru
    _
  // Predicated region
  $region22: #{_quad_forward.1} parent=0 // pred_check
    _
  $region23: #{_quad_forward.1} parent=0 // pred_check_branch
    %471 = sbr.rel (0) target = $region25
  $region24: #{_quad_forward.1} parent=0 // pred_region
    _
  $region25: #{_quad_forward.1} parent=0 // pred_fallthru
    _
  // Predicated region
  $region26: #{_quad_forward.1} parent=0 // pred_check
    _
  $region27: #{_quad_forward.1} parent=0 // pred_check_branch
    %473 = sbr.rel (0) target = $region29
  $region28: #{_quad_forward.1} parent=0 // pred_region
    _
  $region29: #{_quad_forward.1} parent=0 // pred_fallthru
    _

</llo_original>
